<compile_context>
chip_gen: v7x
topology: tpu7x:2x2x1
jax: 0.10.0
libtpu: 0.0.40
codegen_flags: <defaults>
</compile_context>

<pallas_src>
import numpy as np
import jax
import jax.numpy as jnp
from jax.experimental import pallas as pl
from jax.experimental.pallas import tpu as pltpu


def teacher_kernel(y_ref, w_inv_ref, w_ref, b_ref, z_ref):
    """One row-tile of the teacher forward.

    y_ref:     [ec_k, tp, D]  coded inputs, member-major (y_ref[j] = member j of each group)
    w_inv_ref: [D, D]         inverse flow weight (resident across grid)
    w_ref:     [D, D]         flow weight          (resident across grid)
    b_ref:     [1, D]         flow bias            (resident across grid)
    z_ref:     [tp, D]        output latents zj for this row tile
    """
    k = y_ref.shape[0]                      # ec_k (static)
    b = b_ref[...]                          # [1, D]

    # Parity combine on the VPU (no MXU work, no dense C matrix):
    #   yc = ec_k * (y_last - b) - sum_{j < ec_k-1} (y_j - b)  ==  C @ (y - b)
    yc = (y_ref[k - 1] - b) * float(k)      # [tp, D]
    for j in range(k - 1):                  # ec_k is small; unrolled at trace time
        yc = yc - (y_ref[j] - b)

    # model.inverse applied to the combined rows: only P rows hit the MXU
    # (matmul associativity: C @ ((y-b) @ W_inv) == (C @ (y-b)) @ W_inv).
    out = jnp.dot(yc, w_inv_ref[...], preferred_element_type=jnp.float32)   # [tp, D]

    # model(out) forward: zj = out @ W + b   (keep both matmuls: the flow
    # round-trip is the point of the teacher; do NOT collapse W_inv @ W).
    zj = jnp.dot(out, w_ref[...], preferred_element_type=jnp.float32) + b   # [tp, D]

    z_ref[...] = zj.astype(z_ref.dtype)


def teacher_forward(y, w, w_inv, b, ec_k, *, row_tile=128):
    """TeacherModel.forward.

    y: [N, D] coded inputs (N = parity_num * ec_k), w/w_inv: [D, D], b: [D].
    Returns zj: [P, D] with P = N // ec_k.
    """
    N, D = y.shape
    assert N % ec_k == 0, "len(y) must be divisible by ec_k"
    P = N // ec_k

    # Layout plumbing (pure XLA, outside the kernel): [N, D] -> [ec_k, P, D]
    # so each parity-group member j is a lane-dense leading-axis slab y3[j].
    y3 = jnp.transpose(y.reshape(P, ec_k, D), (1, 0, 2))

    # Row tile: full extent when P is small (legal block = full dim), otherwise
    # a sublane-aligned tile (multiple of 8) with zero padding so the grid divides.
    if P <= row_tile:
        tp, P_pad = P, P
    else:
        tp = row_tile
        P_pad = pl.cdiv(P, tp) * tp
        if P_pad != P:
            y3 = jnp.pad(y3, ((0, 0), (0, P_pad - P), (0, 0)))
    num_tiles = P_pad // tp

    b2 = b.reshape(1, D)

    # Advisory cost + a clamped VMEM budget (keeps resident f32 weights +
    # double-buffered activation stream within the scoped limit; capped so it
    # cannot exceed v7x's 64 MiB physical VMEM).
    flops = 2 * (2 * P_pad * D * D) + (ec_k + 1) * P_pad * D
    bytes_accessed = 4 * (ec_k * P_pad * D + 2 * D * D + D + P_pad * D)
    est_vmem = 4 * (2 * D * D + 2 * ec_k * tp * D + 2 * tp * D + D) + (2 << 20)
    vmem_limit = int(min(max(est_vmem, 32 << 20), 64 << 20))

    zj = pl.pallas_call(
        teacher_kernel,
        out_shape=jax.ShapeDtypeStruct((P_pad, D), jnp.float32),
        grid=(num_tiles,),
        in_specs=[
            pl.BlockSpec((ec_k, tp, D), lambda i: (0, i, 0)),   # activation stream (pipelined)
            pl.BlockSpec((D, D), lambda i: (0, 0)),             # W_inv  (resident)
            pl.BlockSpec((D, D), lambda i: (0, 0)),             # W      (resident)
            pl.BlockSpec((1, D), lambda i: (0, 0)),             # bias   (resident)
        ],
        out_specs=pl.BlockSpec((tp, D), lambda i: (i, 0)),
        compiler_params=pltpu.CompilerParams(
            dimension_semantics=("parallel",),
            vmem_limit_bytes=vmem_limit),
        cost_estimate=pl.CostEstimate(flops=flops, transcendentals=0,
                                      bytes_accessed=bytes_accessed),
    )(y3, w_inv, w, b2)

    return zj[:P] if P_pad != P else zj


def teacher_forward_ref(y, w, w_inv, b, ec_k):
    """Pure-JAX reference mirroring the PyTorch loop semantics exactly."""
    N, D = y.shape
    P = N // ec_k
    x = (y - b[None, :]) @ w_inv
    outs = []
    for i in range(P):
        xp = x[(i + 1) * ec_k - 1]
        for j in range(ec_k - 1):
            xp = xp - (1.0 / ec_k) * x[i * ec_k + j]
        xp = xp * ec_k
        outs.append(xp)
    out = jnp.stack(outs)
    return out @ w + b[None, :]


if __name__ == "__main__":
    ec_k = 4
    parity_num = 8
    N = ec_k * parity_num        # 32 coded inputs
    D = 128                      # flattened feature dim (lane-friendly)

    key = jax.random.PRNGKey(0)
    ky, kw, kb = jax.random.split(key, 3)

    # Deterministic, well-conditioned invertible flow weight.
    w = jnp.eye(D, dtype=jnp.float32) + 0.05 * jax.random.normal(kw, (D, D), jnp.float32)
    w_inv = jnp.linalg.inv(w)
    b = 0.1 * jax.random.normal(kb, (D,), jnp.float32)

    y = jax.random.normal(ky, (N, D), jnp.float32)

    zj = teacher_forward(y, w, w_inv, b, ec_k)
    zj = jax.block_until_ready(zj)

    zj_ref = teacher_forward_ref(y, w, w_inv, b, ec_k)
    np.testing.assert_allclose(np.asarray(zj), np.asarray(zj_ref), rtol=1e-4, atol=1e-4)

    print("KERNEL_OK")
</pallas_src>

<mosaic_0001>
module attributes {stable_mosaic.version = 11 : i64} {
  func.func @teacher_kernel(%arg0: i32, %arg1: memref<4x8x128xf32, #tpu.memory_space<vmem>>, %arg2: memref<128x128xf32, #tpu.memory_space<vmem>>, %arg3: memref<128x128xf32, #tpu.memory_space<vmem>>, %arg4: memref<1x128xf32, #tpu.memory_space<vmem>>, %arg5: memref<8x128xf32, #tpu.memory_space<vmem>>) attributes {dimension_semantics = [#tpu.dimension_semantics<parallel>], iteration_bounds = array<i64: 1>, scalar_prefetch = 0 : i64, scratch_operands = 0 : i64, tpu.core_type = #tpu.core_type<tc>, window_params = [{transform_indices = @transform_0, window_bounds = array<i64: 4, 8, 128>}, {pipeline_mode = #tpu.pipeline_mode<synchronous>, transform_indices = @transform_1, window_bounds = array<i64: 128, 128>}, {pipeline_mode = #tpu.pipeline_mode<synchronous>, transform_indices = @transform_2, window_bounds = array<i64: 128, 128>}, {pipeline_mode = #tpu.pipeline_mode<synchronous>, transform_indices = @transform_3, window_bounds = array<i64: 1, 128>}, {transform_indices = @transform_4, window_bounds = array<i64: 8, 128>}]} {
    %c0 = arith.constant 0 : index
    %c0_0 = arith.constant 0 : index
    %0 = vector.load %arg4[%c0, %c0_0] : memref<1x128xf32, #tpu.memory_space<vmem>>, vector<1x128xf32>
    %c3 = arith.constant 3 : index
    %c0_1 = arith.constant 0 : index
    %c0_2 = arith.constant 0 : index
    %1 = vector.load %arg1[%c3, %c0_1, %c0_2] : memref<4x8x128xf32, #tpu.memory_space<vmem>>, vector<1x8x128xf32>
    %2 = vector.shape_cast %1 : vector<1x8x128xf32> to vector<8x128xf32>
    %3 = vector.broadcast %0 : vector<1x128xf32> to vector<8x128xf32>
    %4 = arith.subf %2, %3 : vector<8x128xf32>
    %cst = arith.constant 4.000000e+00 : f32
    %5 = vector.broadcast %cst : f32 to vector<8x128xf32>
    %6 = arith.mulf %4, %5 : vector<8x128xf32>
    %c0_3 = arith.constant 0 : index
    %c0_4 = arith.constant 0 : index
    %c0_5 = arith.constant 0 : index
    %7 = vector.load %arg1[%c0_3, %c0_4, %c0_5] : memref<4x8x128xf32, #tpu.memory_space<vmem>>, vector<1x8x128xf32>
    %8 = vector.shape_cast %7 : vector<1x8x128xf32> to vector<8x128xf32>
    %9 = vector.broadcast %0 : vector<1x128xf32> to vector<8x128xf32>
    %10 = arith.subf %8, %9 : vector<8x128xf32>
    %11 = arith.subf %6, %10 : vector<8x128xf32>
    %c1 = arith.constant 1 : index
    %c0_6 = arith.constant 0 : index
    %c0_7 = arith.constant 0 : index
    %12 = vector.load %arg1[%c1, %c0_6, %c0_7] : memref<4x8x128xf32, #tpu.memory_space<vmem>>, vector<1x8x128xf32>
    %13 = vector.shape_cast %12 : vector<1x8x128xf32> to vector<8x128xf32>
    %14 = vector.broadcast %0 : vector<1x128xf32> to vector<8x128xf32>
    %15 = arith.subf %13, %14 : vector<8x128xf32>
    %16 = arith.subf %11, %15 : vector<8x128xf32>
    %c2 = arith.constant 2 : index
    %c0_8 = arith.constant 0 : index
    %c0_9 = arith.constant 0 : index
    %17 = vector.load %arg1[%c2, %c0_8, %c0_9] : memref<4x8x128xf32, #tpu.memory_space<vmem>>, vector<1x8x128xf32>
    %18 = vector.shape_cast %17 : vector<1x8x128xf32> to vector<8x128xf32>
    %19 = vector.broadcast %0 : vector<1x128xf32> to vector<8x128xf32>
    %20 = arith.subf %18, %19 : vector<8x128xf32>
    %21 = arith.subf %16, %20 : vector<8x128xf32>
    %c0_10 = arith.constant 0 : index
    %c0_11 = arith.constant 0 : index
    %22 = vector.load %arg2[%c0_10, %c0_11] : memref<128x128xf32, #tpu.memory_space<vmem>>, vector<128x128xf32>
    %cst_12 = arith.constant dense<0.000000e+00> : vector<8x128xf32>
    %23 = tpu.matmul %21, %22, %cst_12 {dimension_numbers = #tpu.dot_dimension_numbers<[1], [0], [0], [1], [0, 0, 1, 1], [], []>} : vector<8x128xf32>, vector<128x128xf32>, vector<8x128xf32> -> vector<8x128xf32>
    %c0_13 = arith.constant 0 : index
    %c0_14 = arith.constant 0 : index
    %24 = vector.load %arg3[%c0_13, %c0_14] : memref<128x128xf32, #tpu.memory_space<vmem>>, vector<128x128xf32>
    %cst_15 = arith.constant dense<0.000000e+00> : vector<8x128xf32>
    %25 = tpu.matmul %23, %24, %cst_15 {dimension_numbers = #tpu.dot_dimension_numbers<[1], [0], [0], [1], [0, 0, 1, 1], [], []>} : vector<8x128xf32>, vector<128x128xf32>, vector<8x128xf32> -> vector<8x128xf32>
    %26 = vector.broadcast %0 : vector<1x128xf32> to vector<8x128xf32>
    %27 = arith.addf %25, %26 : vector<8x128xf32>
    %c0_16 = arith.constant 0 : index
    %c0_17 = arith.constant 0 : index
    %28 = vector.load %arg5[%c0_16, %c0_17] : memref<8x128xf32, #tpu.memory_space<vmem>>, vector<8x128xf32>
    tpu.vector_store %arg5[%c0_16, %c0_17], %27 {strides = array<i32>} : memref<8x128xf32, #tpu.memory_space<vmem>>, vector<8x128xf32>,
    return
  }
  func.func @transform_0(%arg0: i32) -> (i32, i32, i32) {
    %c0_i32 = arith.constant 0 : i32
    %c0_i32_0 = arith.constant 0 : i32
    %c0_i32_1 = arith.constant 0 : i32
    return %c0_i32, %arg0, %c0_i32_0 : i32, i32, i32
  }
  func.func @transform_1(%arg0: i32) -> (i32, i32) {
    %c0_i32 = arith.constant 0 : i32
    %c0_i32_0 = arith.constant 0 : i32
    %c0_i32_1 = arith.constant 0 : i32
    return %c0_i32, %c0_i32_0 : i32, i32
  }
  func.func @transform_2(%arg0: i32) -> (i32, i32) {
    %c0_i32 = arith.constant 0 : i32
    %c0_i32_0 = arith.constant 0 : i32
    %c0_i32_1 = arith.constant 0 : i32
    return %c0_i32, %c0_i32_0 : i32, i32
  }
  func.func @transform_3(%arg0: i32) -> (i32, i32) {
    %c0_i32 = arith.constant 0 : i32
    %c0_i32_0 = arith.constant 0 : i32
    %c0_i32_1 = arith.constant 0 : i32
    return %c0_i32, %c0_i32_0 : i32, i32
  }
  func.func @transform_4(%arg0: i32) -> (i32, i32) {
    %c0_i32 = arith.constant 0 : i32
    %c0_i32_0 = arith.constant 0 : i32
    return %arg0, %c0_i32 : i32, i32
  }
}

</mosaic_0001>

<llo_original>
// kernel: tpu_custom_call.1
$region0: #{tpu_custom_call.1}
  #allocation0 [shape = 'u32[]', space=smem, size = 0x4, offset = 0x4, fixed_abs, tag = 'smem constant byte address 0x4 - core index']
  #allocation1 [shape = 'u32[144,128]{1,0:T(1,128)}', space=vmem, size = 0x12000, scoped, tag = 'internal scratch']
  %s0 = inlined_call_operand.hbm [shape: f32[4,8,128], index: 0, kind: input, shape index: {}]
  %s1 = inlined_call_operand.hbm [shape: f32[128,128], index: 1, kind: input, shape index: {}]
  %s2 = inlined_call_operand.hbm [shape: f32[128,128], index: 2, kind: input, shape index: {}]
  %s3 = inlined_call_operand.vmem [shape: f32[1,128], index: 3, kind: input, shape index: {}]
  %s4 = inlined_call_operand.hbm [shape: f32[8,128], index: 4, kind: output, shape index: {}]
  %s5 = sld [smem:[#allocation0]]
  $region38: #{tpu_custom_call.1} parent=0
    _
  %s7 = ssub.s32 1, %s5
  %s8 = scalar_select 0, %s7, %s5
  $region1: #{tpu_custom_call.1} parent=0
    #allocation2 [shape = 'u8[16384]{0}', space=vmem, size = 0x4000, scoped, tag = 'input window, operand 0, single buffered']
    #allocation3 [shape = 's32[1]{0}', space=sflag, size = 0x4, scoped, tag = 'scoped memory for tpu_custom_call.1']
    #allocation4 [shape = 's32[1]{0}', space=sflag, size = 0x4, scoped, tag = 'scoped memory for tpu_custom_call.1']
    #allocation5 [shape = 'u8[65536]{0}', space=vmem, size = 0x10000, scoped, tag = 'input window, operand 1, single buffered']
    #allocation6 [shape = 's32[1]{0}', space=sflag, size = 0x4, scoped, tag = 'scoped memory for tpu_custom_call.1']
    #allocation7 [shape = 'u8[65536]{0}', space=vmem, size = 0x10000, scoped, tag = 'input window, operand 2, single buffered']
    #allocation8 [shape = 'u8[4096]{0}', space=vmem, size = 0x1000, scoped, tag = 'output window, operand 0, single buffered']
    %9 = vsyncpa [#allocation3], 0
    %10 = vsyncpa [#allocation6], 0
    %11 = vsyncpa [#allocation4], 0
    // Predicated region
    $region2: #{tpu_custom_call.1} parent=1 // pred_check
      _
    $region3: #{tpu_custom_call.1} parent=1 // pred_check_branch
      %13 = sbr.rel (0) target = $region5
    $region4: #{tpu_custom_call.1} parent=1 // pred_region
      %s15 = ssub.s32 512, 512
      %16 = vsyncadd [#allocation3], %s15
      %s17 = sshll.u32 [#allocation2], 4
      %s18 = int_to_ptr.vmem [resolvable:$true] %s17
      %23 = dma.hbm_to_vmem [thread:$0]  %s0, 512, %s18, [#allocation3], 128, 128, 8
    $region5: #{tpu_custom_call.1} parent=1 // pred_fallthru
      _
    // Predicated region
    $region6: #{tpu_custom_call.1} parent=1 // pred_check
      _
    $region7: #{tpu_custom_call.1} parent=1 // pred_check_branch
      %25 = sbr.rel (0) target = $region9
    $region8: #{tpu_custom_call.1} parent=1 // pred_region
      %s27 = ssub.s32 2048, 2048
      %28 = vsyncadd [#allocation6], %s27
      %s29 = sshll.u32 [#allocation5], 4
      %s30 = int_to_ptr.vmem [resolvable:$true] %s29
      %35 = dma.hbm_to_vmem [thread:$0]  %s1, 2048, %s30, [#allocation6], 128, 128, 8
    $region9: #{tpu_custom_call.1} parent=1 // pred_fallthru
      _
    // Predicated region
    $region10: #{tpu_custom_call.1} parent=1 // pred_check
      _
    $region11: #{tpu_custom_call.1} parent=1 // pred_check_branch
      %37 = sbr.rel (0) target = $region13
    $region12: #{tpu_custom_call.1} parent=1 // pred_region
      %s39 = ssub.s32 2048, 2048
      %40 = vsyncadd [#allocation6], %s39
      %s41 = sshll.u32 [#allocation7], 4
      %s42 = int_to_ptr.vmem [resolvable:$true] %s41
      %47 = dma.hbm_to_vmem [thread:$0]  %s2, 2048, %s42, [#allocation6], 128, 128, 8
    $region13: #{tpu_custom_call.1} parent=1 // pred_fallthru
      _
    // Predicated region
    $region14: #{tpu_custom_call.1} parent=1 // pred_check
      _
    $region15: #{tpu_custom_call.1} parent=1 // pred_check_branch
      %49 = sbr.rel (0) target = $region17
    $region16: #{tpu_custom_call.1} parent=1 // pred_region
      _
    $region17: #{tpu_custom_call.1} parent=1 // pred_fallthru
      _
    // Predicated region
    $region18: #{tpu_custom_call.1} parent=1 // pred_check
      _
    $region19: #{tpu_custom_call.1} parent=1 // pred_check_branch
      %51 = sbr.rel (0) target = $region21
    $region20: #{tpu_custom_call.1} parent=1 // pred_region
      %52 = dma.done [#allocation3], 512
    $region21: #{tpu_custom_call.1} parent=1 // pred_fallthru
      _
    // Predicated region
    $region22: #{tpu_custom_call.1} parent=1 // pred_check
      _
    $region23: #{tpu_custom_call.1} parent=1 // pred_check_branch
      %54 = sbr.rel (0) target = $region25
    $region24: #{tpu_custom_call.1} parent=1 // pred_region
      %55 = dma.done [#allocation6], 2048
    $region25: #{tpu_custom_call.1} parent=1 // pred_fallthru
      _
    // Predicated region
    $region26: #{tpu_custom_call.1} parent=1 // pred_check
      _
    $region27: #{tpu_custom_call.1} parent=1 // pred_check_branch
      %57 = sbr.rel (0) target = $region29
    $region28: #{tpu_custom_call.1} parent=1 // pred_region
      %58 = dma.done [#allocation6], 2048
    $region29: #{tpu_custom_call.1} parent=1 // pred_fallthru
      _
    %v59 = vld [vmem:[%s3] sm:$0x1]
    %s60 = scalar_lea.vmem [#allocation2], 24
    %v61 = vld [vmem:[%s60] sm:$0xff]
    %v63 = vlaneseq
    %v64 = vshrl.u32 %v63, 7
    %v65 = vsub.s32 0, %v64
    %v66 = vrot.slane %v59, %v65
    %v68 = vsub.f32 %v61, %v66
    %v69 = vmul.f32 %v68, 4.0
    %v70 = vld [vmem:[#allocation2] sm:$0xff]
    %v71 = vsub.f32 %v70, %v66
    %v72 = vsub.f32 %v69, %v71
    %s73 = scalar_lea.vmem [#allocation2], 8
    %v74 = vld [vmem:[%s73] sm:$0xff]
    %v75 = vsub.f32 %v74, %v66
    %v76 = vsub.f32 %v72, %v75
    %s77 = scalar_lea.vmem [#allocation2], 16
    %v78 = vld [vmem:[%s77] sm:$0xff]
    %v79 = vsub.f32 %v78, %v66
    %v80 = vsub.f32 %v76, %v79
    %v81 = vld [vmem:[#allocation5] sm:$0xff]
    %v82 = vld [vmem:[#allocation5 + $0x8] sm:$0xff]
    %v83 = vld [vmem:[#allocation5 + $0x10] sm:$0xff]
    %v84 = vld [vmem:[#allocation5 + $0x18] sm:$0xff]
    %v85 = vld [vmem:[#allocation5 + $0x20] sm:$0xff]
    %v86 = vld [vmem:[#allocation5 + $0x28] sm:$0xff]
    %v87 = vld [vmem:[#allocation5 + $0x30] sm:$0xff]
    %v88 = vld [vmem:[#allocation5 + $0x38] sm:$0xff]
    %v89 = vld [vmem:[#allocation5 + $0x40] sm:$0xff]
    %v90 = vld [vmem:[#allocation5 + $0x48] sm:$0xff]
    %v91 = vld [vmem:[#allocation5 + $0x50] sm:$0xff]
    %v92 = vld [vmem:[#allocation5 + $0x58] sm:$0xff]
    %v93 = vld [vmem:[#allocation5 + $0x60] sm:$0xff]
    %v94 = vld [vmem:[#allocation5 + $0x68] sm:$0xff]
    %v95 = vld [vmem:[#allocation5 + $0x70] sm:$0xff]
    %v96 = vld [vmem:[#allocation5 + $0x78] sm:$0xff]
    %97 = vmatprep.subr.mxu0 0.0
    %98 = vmatpush1.msra.mxu0 %v81
    %99 = vmatprep.subr.mxu0 0.0
    %100 = vmatpush1.msra.mxu0 %v82
    %101 = vmatprep.subr.mxu0 0.0
    %102 = vmatpush1.msra.mxu0 %v83
    %103 = vmatprep.subr.mxu0 0.0
    %104 = vmatpush1.msra.mxu0 %v84
    %105 = vmatprep.subr.mxu0 0.0
    %106 = vmatpush1.msra.mxu0 %v85
    %107 = vmatprep.subr.mxu0 0.0
    %108 = vmatpush1.msra.mxu0 %v86
    %109 = vmatprep.subr.mxu0 0.0
    %110 = vmatpush1.msra.mxu0 %v87
    %111 = vmatprep.subr.mxu0 0.0
    %112 = vmatpush1.msra.mxu0 %v88
    %113 = vmatprep.subr.mxu0 0.0
    %114 = vmatpush1.msra.mxu0 %v89
    %115 = vmatprep.subr.mxu0 0.0
    %116 = vmatpush1.msra.mxu0 %v90
    %117 = vmatprep.subr.mxu0 0.0
    %118 = vmatpush1.msra.mxu0 %v91
    %119 = vmatprep.subr.mxu0 0.0
    %120 = vmatpush1.msra.mxu0 %v92
    %121 = vmatprep.subr.mxu0 0.0
    %122 = vmatpush1.msra.mxu0 %v93
    %123 = vmatprep.subr.mxu0 0.0
    %124 = vmatpush1.msra.mxu0 %v94
    %125 = vmatprep.subr.mxu0 0.0
    %126 = vmatpush1.msra.mxu0 %v95
    %127 = vmatprep.subr.mxu0 0.0
    %128 = vmatpush1.msra.mxu0 %v96
    %129 = vmatprep.subr.mxu0 0.0
    %130 = vmatpush1.msra.mxu0 0.0
    %131 = vmatprep.subr.mxu0 0.0
    %132 = vmatpush1.msra.mxu0 0.0
    %133 = vmatprep.subr.mxu0 0.0
    %134 = vmatpush1.msra.mxu0 0.0
    %135 = vmatprep.subr.mxu0 0.0
    %136 = vmatpush1.msra.mxu0 0.0
    %137 = vmatprep.subr.mxu0 0.0
    %138 = vmatpush1.msra.mxu0 0.0
    %139 = vmatprep.subr.mxu0 0.0
    %140 = vmatpush1.msra.mxu0 0.0
    %141 = vmatprep.subr.mxu0 0.0
    %142 = vmatpush1.msra.mxu0 0.0
    %143 = vmatprep.subr.mxu0 0.0
    %144 = vmatpush1.msra.mxu0 0.0
    %145 = vmatprep.subr.mxu0 0.0
    %146 = vmatpush1.msra.mxu0 0.0
    %147 = vmatprep.subr.mxu0 0.0
    %148 = vmatpush1.msra.mxu0 0.0
    %149 = vmatprep.subr.mxu0 0.0
    %150 = vmatpush1.msra.mxu0 0.0
    %151 = vmatprep.subr.mxu0 0.0
    %152 = vmatpush1.msra.mxu0 0.0
    %153 = vmatprep.subr.mxu0 0.0
    %154 = vmatpush1.msra.mxu0 0.0
    %155 = vmatprep.subr.mxu0 0.0
    %156 = vmatpush1.msra.mxu0 0.0
    %157 = vmatprep.subr.mxu0 0.0
    %158 = vmatpush1.msra.mxu0 0.0
    %159 = vmatprep.subr.mxu0 0.0
    %160 = vmatpush1.msra.mxu0 0.0
    %161 = vmatprep.mubr.f32.mxu0 0.0
    %162 = vmatmul.mubr.f32.gmra.mrb[0].mxu0 %v80
    %v163 = vpop.f32.mrb[0].mxu0
    %v164 = vadd.f32 0.0, %v163
    %v165 = vpop.f32.mrb[0].mxu0
    %166 = vdwg.mxu0
    %v167 = vld [vmem:[#allocation7] sm:$0xff]
    %v168 = vld [vmem:[#allocation7 + $0x8] sm:$0xff]
    %v169 = vld [vmem:[#allocation7 + $0x10] sm:$0xff]
    %v170 = vld [vmem:[#allocation7 + $0x18] sm:$0xff]
    %v171 = vld [vmem:[#allocation7 + $0x20] sm:$0xff]
    %v172 = vld [vmem:[#allocation7 + $0x28] sm:$0xff]
    %v173 = vld [vmem:[#allocation7 + $0x30] sm:$0xff]
    %v174 = vld [vmem:[#allocation7 + $0x38] sm:$0xff]
    %v175 = vld [vmem:[#allocation7 + $0x40] sm:$0xff]
    %v176 = vld [vmem:[#allocation7 + $0x48] sm:$0xff]
    %v177 = vld [vmem:[#allocation7 + $0x50] sm:$0xff]
    %v178 = vld [vmem:[#allocation7 + $0x58] sm:$0xff]
    %v179 = vld [vmem:[#allocation7 + $0x60] sm:$0xff]
    %v180 = vld [vmem:[#allocation7 + $0x68] sm:$0xff]
    %v181 = vld [vmem:[#allocation7 + $0x70] sm:$0xff]
    %v182 = vld [vmem:[#allocation7 + $0x78] sm:$0xff]
    %183 = vmatprep.subr.mxu0 0.0
    %184 = vmatpush1.msra.mxu0 %v167
    %185 = vmatprep.subr.mxu0 0.0
    %186 = vmatpush1.msra.mxu0 %v168
    %187 = vmatprep.subr.mxu0 0.0
    %188 = vmatpush1.msra.mxu0 %v169
    %189 = vmatprep.subr.mxu0 0.0
    %190 = vmatpush1.msra.mxu0 %v170
    %191 = vmatprep.subr.mxu0 0.0
    %192 = vmatpush1.msra.mxu0 %v171
    %193 = vmatprep.subr.mxu0 0.0
    %194 = vmatpush1.msra.mxu0 %v172
    %195 = vmatprep.subr.mxu0 0.0
    %196 = vmatpush1.msra.mxu0 %v173
    %197 = vmatprep.subr.mxu0 0.0
    %198 = vmatpush1.msra.mxu0 %v174
    %199 = vmatprep.subr.mxu0 0.0
    %200 = vmatpush1.msra.mxu0 %v175
    %201 = vmatprep.subr.mxu0 0.0
    %202 = vmatpush1.msra.mxu0 %v176
    %203 = vmatprep.subr.mxu0 0.0
    %204 = vmatpush1.msra.mxu0 %v177
    %205 = vmatprep.subr.mxu0 0.0
    %206 = vmatpush1.msra.mxu0 %v178
    %207 = vmatprep.subr.mxu0 0.0
    %208 = vmatpush1.msra.mxu0 %v179
    %209 = vmatprep.subr.mxu0 0.0
    %210 = vmatpush1.msra.mxu0 %v180
    %211 = vmatprep.subr.mxu0 0.0
    %212 = vmatpush1.msra.mxu0 %v181
    %213 = vmatprep.subr.mxu0 0.0
    %214 = vmatpush1.msra.mxu0 %v182
    %215 = vmatprep.subr.mxu0 0.0
    %216 = vmatpush1.msra.mxu0 0.0
    %217 = vmatprep.subr.mxu0 0.0
    %218 = vmatpush1.msra.mxu0 0.0
    %219 = vmatprep.subr.mxu0 0.0
    %220 = vmatpush1.msra.mxu0 0.0
    %221 = vmatprep.subr.mxu0 0.0
    %222 = vmatpush1.msra.mxu0 0.0
    %223 = vmatprep.subr.mxu0 0.0
    %224 = vmatpush1.msra.mxu0 0.0
    %225 = vmatprep.subr.mxu0 0.0
    %226 = vmatpush1.msra.mxu0 0.0
    %227 = vmatprep.subr.mxu0 0.0
    %228 = vmatpush1.msra.mxu0 0.0
    %229 = vmatprep.subr.mxu0 0.0
    %230 = vmatpush1.msra.mxu0 0.0
    %231 = vmatprep.subr.mxu0 0.0
    %232 = vmatpush1.msra.mxu0 0.0
    %233 = vmatprep.subr.mxu0 0.0
    %234 = vmatpush1.msra.mxu0 0.0
    %235 = vmatprep.subr.mxu0 0.0
    %236 = vmatpush1.msra.mxu0 0.0
    %237 = vmatprep.subr.mxu0 0.0
    %238 = vmatpush1.msra.mxu0 0.0
    %239 = vmatprep.subr.mxu0 0.0
    %240 = vmatpush1.msra.mxu0 0.0
    %241 = vmatprep.subr.mxu0 0.0
    %242 = vmatpush1.msra.mxu0 0.0
    %243 = vmatprep.subr.mxu0 0.0
    %244 = vmatpush1.msra.mxu0 0.0
    %245 = vmatprep.subr.mxu0 0.0
    %246 = vmatpush1.msra.mxu0 0.0
    %247 = vmatprep.mubr.f32.mxu0 0.0
    %248 = vmatmul.mubr.f32.gmra.mrb[0].mxu0 %v164
    %v249 = vpop.f32.mrb[0].mxu0
    %v250 = vadd.f32 %v66, %v249
    %v251 = vpop.f32.mrb[0].mxu0
    %252 = vdwg.mxu0
    %253 = vst [vmem:[#allocation8] sm:$0xff] %v250
    // Predicated region
    $region30: #{tpu_custom_call.1} parent=1 // pred_check
      _
    $region31: #{tpu_custom_call.1} parent=1 // pred_check_branch
      %255 = sbr.rel (0) target = $region33
    $region32: #{tpu_custom_call.1} parent=1 // pred_region
      %s257 = ssub.s32 128, 128
      %258 = vsyncadd [#allocation4], %s257
      %s260 = sshll.u32 [#allocation8], 4
      %s261 = int_to_ptr.vmem [resolvable:$true] %s260
      %263 = dma.vmem_to_hbm [thread:$0]  %s261, 128, %s4, [#allocation4]
    $region33: #{tpu_custom_call.1} parent=1 // pred_fallthru
      _
    // Predicated region
    $region34: #{tpu_custom_call.1} parent=1 // pred_check
      _
    $region35: #{tpu_custom_call.1} parent=1 // pred_check_branch
      %265 = sbr.rel (0) target = $region37
    $region36: #{tpu_custom_call.1} parent=1 // pred_region
      %266 = dma.done [#allocation4], 128
    $region37: #{tpu_custom_call.1} parent=1 // pred_fallthru
      _
    %267 = vsyncpa [#allocation3], 1
    %268 = vsyncpa [#allocation6], 1
    %269 = vsyncpa [#allocation4], 1

</llo_original>
